<compile_context>
chip_gen: v6e
topology: v6e:2x2x1
jax: 0.10.0
libtpu: 0.0.40
codegen_flags: <defaults>
</compile_context>

<pallas_src>
import functools

import numpy as np
import jax
import jax.numpy as jnp
from jax import lax
from jax.experimental import pallas as pl
from jax.experimental.pallas import tpu as pltpu

INPUT_DIM = 4
HIDDEN = 32
NDIM = 2
POS_STD = 1.0
PACK = 8        # nodes per packed encoder row: 8*32 = 256 lanes (use 4 on v5e)
SEG_PACK = 4    # segments per packed pooled-output row: 4*32 = 128 lanes
_INV_SQRT2 = 0.7071067811865476
_TWO_PI = 2.0 * np.pi


def _gelu(v):
    # exact (erf-based) GELU, matching torch.nn.GELU() default
    return 0.5 * v * (1.0 + lax.erf(v * _INV_SQRT2))


def _round_up(a, b):
    return (a + b - 1) // b * b


def _block_diag(block, n):
    r, c = block.shape
    out = jnp.zeros((n * r, n * c), block.dtype)
    for i in range(n):
        out = out.at[i * r:(i + 1) * r, i * c:(i + 1) * c].set(block)
    return out


# ----------------------------------------------------------------------------
# Kernel 1: input_proj MLP + gaussian sincos positional embedding
#   PACK nodes per row; all loads/stores lane-dense; pos matmul fused into the
#   first MXU push; sin folded into cos via a -pi/2 phase baked into the bias.
# ----------------------------------------------------------------------------
def pack_encoder_params(params):
    w1, b1, w2, b2, w3, b3 = params["input_proj"]
    bt = params["b_t"]                                    # (NDIM, HIDDEN // 2)
    feat = INPUT_DIM + NDIM
    # per-node layer 1: [x | pos](6) -> [h1(32) | 2*pi*pos@[bt|bt](32)]
    w1h = jnp.zeros((feat, HIDDEN), jnp.float32).at[:INPUT_DIM, :].set(w1)
    btd = _TWO_PI * jnp.concatenate([bt, bt], axis=1)     # (NDIM, HIDDEN)
    w1p = jnp.zeros((feat, HIDDEN), jnp.float32).at[INPUT_DIM:, :].set(btd)
    p1 = jnp.concatenate([_block_diag(w1h, PACK), _block_diag(w1p, PACK)], axis=1)
    # positional "bias" = phase: first 16 lanes 0 (-> cos), last 16 -pi/2 (-> sin)
    phase = jnp.concatenate(
        [jnp.zeros((1, HIDDEN // 2), jnp.float32),
         jnp.full((1, HIDDEN // 2), -0.5 * np.pi, jnp.float32)], axis=1)
    bb1 = jnp.concatenate([jnp.tile(b1, (1, PACK)), jnp.tile(phase, (1, PACK))], axis=1)
    p2, bb2 = _block_diag(w2, PACK), jnp.tile(b2, (1, PACK))
    p3, bb3 = _block_diag(w3, PACK), jnp.tile(b3, (1, PACK))
    return p1, bb1, p2, bb2, p3, bb3


def _encoder_kernel(xp_ref, w1, b1, w2, b2, w3, b3, out_ref):
    z = jnp.dot(xp_ref[...], w1[...], preferred_element_type=jnp.float32) + b1[...]
    h = _gelu(z[:, :PACK * HIDDEN])       # first 256 lanes: PACK nodes' hidden
    p = z[:, PACK * HIDDEN:]              # last 256 lanes: pos freqs (+ phase)
    h = _gelu(jnp.dot(h, w2[...], preferred_element_type=jnp.float32) + b2[...])
    h = jnp.dot(h, w3[...], preferred_element_type=jnp.float32) + b3[...]
    out_ref[...] = (h + jnp.cos(p)).astype(out_ref.dtype)


def encoder(x, pos, params, *, tile_rows=1024):
    n = x.shape[0]
    feat = INPUT_DIM + NDIM
    p1, b1, p2, b2, p3, b3 = pack_encoder_params(params)

    n_pack = _round_up(n, PACK)
    xp = jnp.concatenate([x, pos], axis=1)                # [N, 6]
    xp = jnp.pad(xp, ((0, n_pack - n), (0, 0)))
    rows = n_pack // PACK
    tr = min(tile_rows, _round_up(rows, 16))
    rows_pad = _round_up(rows, tr)
    xp = xp.reshape(rows, PACK * feat)                    # [rows, 48] (free reshape)
    xp = jnp.pad(xp, ((0, rows_pad - rows), (0, 0)))

    def full(a):
        return pl.BlockSpec(a.shape, lambda i: (0,) * a.ndim)

    out = pl.pallas_call(
        _encoder_kernel,
        out_shape=jax.ShapeDtypeStruct((rows_pad, PACK * HIDDEN), jnp.bfloat16),
        grid=(rows_pad // tr,),
        in_specs=[
            pl.BlockSpec((tr, PACK * feat), lambda i: (i, 0)),
            full(p1), full(b1), full(p2), full(b2), full(p3), full(b3),
        ],
        out_specs=pl.BlockSpec((tr, PACK * HIDDEN), lambda i: (i, 0)),
        compiler_params=pltpu.CompilerParams(dimension_semantics=("parallel",)),
    )(xp, p1, b1, p2, b2, p3, b3)
    # [rows_pad, 256] -> [N, 32] is a contiguous (free) reshape in the wrapper.
    return out[:rows].reshape(n_pack, HIDDEN)[:n]


# ----------------------------------------------------------------------------
# Kernel 2 (fused): message MLP + segment_csr(mean)
#   Dense padded, group-of-4 interleaved edge layout -> static lane-dense
#   blocks, auto-pipelined, "parallel" grid.  Reduction via a small one-hot
#   MXU matmul; padding rows removed analytically with a v_pad correction.
# ----------------------------------------------------------------------------
def _msg_pool_kernel(e_ref, cnt_ref, m1, c1, m2, c2, m3, c3, vpad_ref, out_ref,
                     *, max_deg):
    e = e_ref[...]                                                   # [prow, 256] bf16
    h = _gelu(jnp.dot(e, m1[...], preferred_element_type=jnp.float32) + c1[...])
    h = _gelu(jnp.dot(h.astype(jnp.bfloat16), m2[...],
                      preferred_element_type=jnp.float32) + c2[...])
    m = jnp.dot(h.astype(jnp.bfloat16), m3[...],
                preferred_element_type=jnp.float32) + c3[...]        # [prow, 128] f32

    g4 = out_ref.shape[0]                      # segment-groups (of 4) in this chunk
    prow = m.shape[0]
    r = lax.broadcasted_iota(jnp.int32, (g4, prow), 1)
    p = lax.broadcasted_iota(jnp.int32, (g4, prow), 0)
    sel = jnp.logical_and(r >= p * max_deg, r < (p + 1) * max_deg).astype(jnp.float32)
    sums = jnp.dot(sel, m, preferred_element_type=jnp.float32)       # [g4, 128]

    cnt = cnt_ref[...]                                               # [g4, 128] f32
    sums = sums - (max_deg - cnt) * vpad_ref[...]     # strip zero-input padding rows
    out_ref[...] = sums * pl.reciprocal(jnp.maximum(cnt, 1.0), approx=True)


def message_pool(e, indptr_np, counts_np, params, num_segments, max_deg, *, gseg=128):
    """e: [E, 2H] edge features grouped by dst; indptr_np/counts_np: host-side CSR."""
    m1, c1, m2, c2, m3, c3 = params["message"]
    h2 = 2 * HIDDEN
    gseg = _round_up(max(gseg, 32), 32)           # keeps gseg/4 a multiple of 8
    md = _round_up(max(int(max_deg), 1), 2)       # even -> bf16-friendly sublanes
    s_pad = _round_up(num_segments, gseg)
    g4_total = s_pad // SEG_PACK
    prow_total = g4_total * md                    # total packed edge rows
    prow = (gseg // SEG_PACK) * md                # packed edge rows per chunk

    # scatter edges into the dense per-segment padded layout, then interleave
    # groups of 4 segments so each packed row is 4 edges x 2H = 256 lanes.
    n_e = e.shape[0]
    seg_id = np.repeat(np.arange(num_segments, dtype=np.int64), counts_np)
    rank = np.arange(n_e, dtype=np.int64) - np.repeat(indptr_np[:-1], counts_np)
    rows = jnp.asarray(seg_id * md + rank, dtype=jnp.int32)
    e_dense = jnp.zeros((s_pad * md, h2), jnp.bfloat16).at[rows].set(
        e.astype(jnp.bfloat16))
    e_packed = (e_dense.reshape(g4_total, SEG_PACK, md, h2)
                .transpose(0, 2, 1, 3)
                .reshape(prow_total, SEG_PACK * h2))

    # lane-dense per-segment counts: [g4, 128], each count broadcast over 32 lanes
    cnt = np.zeros((s_pad,), np.float32)
    cnt[:num_segments] = counts_np
    cnt_packed = jnp.asarray(np.repeat(cnt.reshape(g4_total, SEG_PACK), HIDDEN, axis=1))

    # block-diagonal (4 edges / row) message weights (bf16); biases stay f32
    pm1, pc1 = _block_diag(m1, SEG_PACK).astype(jnp.bfloat16), jnp.tile(c1, (1, SEG_PACK))
    pm2, pc2 = _block_diag(m2, SEG_PACK).astype(jnp.bfloat16), jnp.tile(c2, (1, SEG_PACK))
    pm3, pc3 = _block_diag(m3, SEG_PACK).astype(jnp.bfloat16), jnp.tile(c3, (1, SEG_PACK))

    # MLP output of an all-zero (padding) edge row, same cast pattern as kernel
    v = _gelu(c1)
    v = _gelu(jnp.dot(v.astype(jnp.bfloat16), m2.astype(jnp.bfloat16),
                      preferred_element_type=jnp.float32) + c2)
    v = jnp.dot(v.astype(jnp.bfloat16), m3.astype(jnp.bfloat16),
                preferred_element_type=jnp.float32) + c3
    v_pad = jnp.tile(v, (1, SEG_PACK))                               # [1, 128] f32

    kern = functools.partial(_msg_pool_kernel, max_deg=md)

    def full(a):
        return pl.BlockSpec(a.shape, lambda g: (0,) * a.ndim)

    out = pl.pallas_call(
        kern,
        out_shape=jax.ShapeDtypeStruct((g4_total, SEG_PACK * HIDDEN), jnp.float32),
        grid=(s_pad // gseg,),
        in_specs=[
            pl.BlockSpec((prow, SEG_PACK * h2), lambda g: (g, 0)),         # edges
            pl.BlockSpec((gseg // SEG_PACK, SEG_PACK * HIDDEN), lambda g: (g, 0)),
            full(pm1), full(pc1), full(pm2), full(pc2), full(pm3), full(pc3),
            full(v_pad),
        ],
        out_specs=pl.BlockSpec((gseg // SEG_PACK, SEG_PACK * HIDDEN), lambda g: (g, 0)),
        compiler_params=pltpu.CompilerParams(dimension_semantics=("parallel",)),
    )(e_packed, cnt_packed, pm1, pc1, pm2, pc2, pm3, pc3, v_pad)
    # [g4, 128] -> [s_pad, 32] is a contiguous (free) reshape
    return out.reshape(s_pad, HIDDEN)[:num_segments]


# ----------------------------------------------------------------------------
# Full forward
# ----------------------------------------------------------------------------
def cfd_pool_forward(x, mesh_pos, mesh_edges, batch_idx, params, indptr, max_deg,
                     *, tile_rows=1024, gseg=128):
    ind_np = np.asarray(indptr).astype(np.int64)
    counts_np = np.diff(ind_np)
    assert counts_np.min() >= 0 and counts_np.max() <= max_deg

    h = encoder(x, mesh_pos, params, tile_rows=tile_rows)            # [N, H] bf16

    # TODO(synk): the data-dependent node->edge gather (and the scatter into the
    # dense padded edge layout) stays in XLA glue; it runs in bf16 to halve the
    # dominant [E, 2H] HBM stream.  Fusing it in-kernel (VMEM-resident h with an
    # in-kernel take) is a further win when N*H fits VMEM.
    dst_idx = mesh_edges[:, 0]
    src_idx = mesh_edges[:, 1]
    e = jnp.concatenate([jnp.take(h, src_idx, axis=0),
                         jnp.take(h, dst_idx, axis=0)], axis=1)      # [E, 2H] bf16

    num_segments = ind_np.shape[0] - 1
    pooled = message_pool(e, ind_np, counts_np, params, num_segments, max_deg,
                          gseg=gseg)

    batch_size = int(np.asarray(batch_idx).max()) + 1
    assert num_segments % batch_size == 0
    return pooled.reshape(batch_size, num_segments // batch_size, HIDDEN)


# ----------------------------------------------------------------------------
# Deterministic parameter init (xavier_uniform weights, zero bias)
# ----------------------------------------------------------------------------
def make_params(key):
    keys = jax.random.split(key, 8)

    def xavier(k, fi, fo):
        limit = float(np.sqrt(6.0 / (fi + fo)))
        return jax.random.uniform(k, (fi, fo), jnp.float32, -limit, limit)

    zb = lambda d: jnp.zeros((1, d), jnp.float32)
    input_proj = (
        xavier(keys[0], INPUT_DIM, HIDDEN), zb(HIDDEN),
        xavier(keys[1], HIDDEN, HIDDEN), zb(HIDDEN),
        xavier(keys[2], HIDDEN, HIDDEN), zb(HIDDEN),
    )
    message = (
        xavier(keys[3], 2 * HIDDEN, 2 * HIDDEN), zb(2 * HIDDEN),
        xavier(keys[4], 2 * HIDDEN, HIDDEN), zb(HIDDEN),
        xavier(keys[5], HIDDEN, HIDDEN), zb(HIDDEN),
    )
    # gaussian positional frequencies (torch buffer `b`: (hidden//2, ndim))
    b_gauss = POS_STD * jax.random.normal(keys[6], (HIDDEN // 2, NDIM), jnp.float32)
    return {"input_proj": input_proj, "message": message, "b_t": b_gauss.T}


# ----------------------------------------------------------------------------
# Plain-JAX reference (mirrors the torch forward) for a sanity check
# ----------------------------------------------------------------------------
def reference(x, mesh_pos, mesh_edges, params, counts, batch_size):
    hi = jax.lax.Precision.HIGHEST

    def gelu(v):
        return 0.5 * v * (1.0 + lax.erf(v * _INV_SQRT2))

    w1, b1, w2, b2, w3, b3 = params["input_proj"]
    m1, c1, m2, c2, m3, c3 = params["message"]
    bt = params["b_t"]
    h = gelu(jnp.dot(x, w1, precision=hi) + b1)
    h = gelu(jnp.dot(h, w2, precision=hi) + b2)
    h = jnp.dot(h, w3, precision=hi) + b3
    p = _TWO_PI * jnp.dot(mesh_pos, bt, precision=hi)
    h = h + jnp.concatenate([jnp.cos(p), jnp.sin(p)], axis=-1)
    dst_idx, src_idx = mesh_edges[:, 0], mesh_edges[:, 1]
    e = jnp.concatenate([h[src_idx], h[dst_idx]], axis=1)
    m = gelu(jnp.dot(e, m1, precision=hi) + c1)
    m = gelu(jnp.dot(m, m2, precision=hi) + c2)
    m = jnp.dot(m, m3, precision=hi) + c3
    num_segments = counts.shape[0]
    seg_ids = np.repeat(np.arange(num_segments), counts)
    sums = jax.ops.segment_sum(m, jnp.asarray(seg_ids), num_segments=num_segments)
    means = sums / jnp.asarray(counts, jnp.float32)[:, None]
    return means.reshape(batch_size, num_segments // batch_size, HIDDEN)


if __name__ == "__main__":
    # ---- synthetic graph -------------------------------------------------
    num_nodes = 64
    batch_size = 2
    nodes_per_batch = num_nodes // batch_size
    supernodes_per_batch = 8
    supernodes = np.concatenate(
        [np.arange(supernodes_per_batch), nodes_per_batch + np.arange(supernodes_per_batch)]
    ).astype(np.int32)
    num_segments = supernodes.shape[0]  # 16
    degrees = (3 + (np.arange(num_segments) % 5)).astype(np.int32)  # 3..7

    rng = np.random.default_rng(0)
    dst_list, src_list = [], []
    for k, node in enumerate(supernodes):
        b = 0 if node < nodes_per_batch else 1
        dst_list.append(np.full(degrees[k], node, dtype=np.int32))
        src_list.append(
            rng.integers(b * nodes_per_batch, (b + 1) * nodes_per_batch,
                         size=degrees[k]).astype(np.int32)
        )
    dst = np.concatenate(dst_list)
    src = np.concatenate(src_list)
    mesh_edges = np.stack([dst, src], axis=1).astype(np.int32)  # col0 = dst, col1 = src
    batch_idx = np.repeat(np.arange(batch_size, dtype=np.int32), nodes_per_batch)

    indptr = np.zeros(num_segments + 1, dtype=np.int32)
    indptr[1:] = np.cumsum(degrees)
    max_deg = int(np.ceil(degrees.max() / 8) * 8)  # 8

    # ---- inputs + params ---------------------------------------------------
    key = jax.random.PRNGKey(0)
    k_par, k_x, k_pos = jax.random.split(key, 3)
    params = make_params(k_par)
    x = jax.random.normal(k_x, (num_nodes, INPUT_DIM), jnp.float32)
    mesh_pos = jax.random.uniform(k_pos, (num_nodes, NDIM), jnp.float32)

    # ---- run ---------------------------------------------------------------
    out = cfd_pool_forward(
        x, mesh_pos, jnp.asarray(mesh_edges), batch_idx, params,
        jnp.asarray(indptr), max_deg,
    )
    out = jax.block_until_ready(out)

    ref = reference(x, mesh_pos, jnp.asarray(mesh_edges), params, degrees, batch_size)
    assert out.shape == (batch_size, num_segments // batch_size, HIDDEN)
    np.testing.assert_allclose(np.asarray(out), np.asarray(ref), rtol=2e-2, atol=2e-2)
    print("KERNEL_OK")
</pallas_src>

<mosaic_0001>
module attributes {stable_mosaic.version = 11 : i64} {
  func.func @_encoder_kernel(%arg0: i32, %arg1: memref<16x48xf32, #tpu.memory_space<vmem>>, %arg2: memref<48x512xf32, #tpu.memory_space<vmem>>, %arg3: memref<1x512xf32, #tpu.memory_space<vmem>>, %arg4: memref<256x256xf32, #tpu.memory_space<vmem>>, %arg5: memref<1x256xf32, #tpu.memory_space<vmem>>, %arg6: memref<256x256xf32, #tpu.memory_space<vmem>>, %arg7: memref<1x256xf32, #tpu.memory_space<vmem>>, %arg8: memref<16x256xbf16, #tpu.memory_space<vmem>>) attributes {dimension_semantics = [#tpu.dimension_semantics<parallel>], iteration_bounds = array<i64: 1>, scalar_prefetch = 0 : i64, scratch_operands = 0 : i64, tpu.core_type = #tpu.core_type<tc>, window_params = [{transform_indices = @transform_0, window_bounds = array<i64: 16, 48>}, {pipeline_mode = #tpu.pipeline_mode<synchronous>, transform_indices = @transform_1, window_bounds = array<i64: 48, 512>}, {pipeline_mode = #tpu.pipeline_mode<synchronous>, transform_indices = @transform_2, window_bounds = array<i64: 1, 512>}, {pipeline_mode = #tpu.pipeline_mode<synchronous>, transform_indices = @transform_3, window_bounds = array<i64: 256, 256>}, {pipeline_mode = #tpu.pipeline_mode<synchronous>, transform_indices = @transform_4, window_bounds = array<i64: 1, 256>}, {pipeline_mode = #tpu.pipeline_mode<synchronous>, transform_indices = @transform_5, window_bounds = array<i64: 256, 256>}, {pipeline_mode = #tpu.pipeline_mode<synchronous>, transform_indices = @transform_6, window_bounds = array<i64: 1, 256>}, {transform_indices = @transform_7, window_bounds = array<i64: 16, 256>}]} {
    %c0 = arith.constant 0 : index
    %c0_0 = arith.constant 0 : index
    %0 = vector.load %arg1[%c0, %c0_0] : memref<16x48xf32, #tpu.memory_space<vmem>>, vector<16x48xf32>
    %c0_1 = arith.constant 0 : index
    %c0_2 = arith.constant 0 : index
    %1 = vector.load %arg2[%c0_1, %c0_2] : memref<48x512xf32, #tpu.memory_space<vmem>>, vector<48x512xf32>
    %cst = arith.constant dense<0.000000e+00> : vector<16x512xf32>
    %2 = tpu.matmul %0, %1, %cst {dimension_numbers = #tpu.dot_dimension_numbers<[1], [0], [0], [1], [0, 0, 1, 1], [], []>} : vector<16x48xf32>, vector<48x512xf32>, vector<16x512xf32> -> vector<16x512xf32>
    %c0_3 = arith.constant 0 : index
    %c0_4 = arith.constant 0 : index
    %3 = vector.load %arg3[%c0_3, %c0_4] : memref<1x512xf32, #tpu.memory_space<vmem>>, vector<1x512xf32>
    %4 = vector.broadcast %3 : vector<1x512xf32> to vector<16x512xf32>
    %5 = arith.addf %2, %4 : vector<16x512xf32>
    %6 = vector.extract_strided_slice %5 {offsets = [0, 0], sizes = [16, 256], strides = [1, 1]} : vector<16x512xf32> to vector<16x256xf32>
    %cst_5 = arith.constant 5.000000e-01 : f32
    %7 = vector.broadcast %cst_5 : f32 to vector<16x256xf32>
    %8 = arith.mulf %7, %6 : vector<16x256xf32>
    %cst_6 = arith.constant 0.707106769 : f32
    %9 = vector.broadcast %cst_6 : f32 to vector<16x256xf32>
    %10 = arith.mulf %6, %9 : vector<16x256xf32>
    %11 = math.erf %10 : vector<16x256xf32>
    %cst_7 = arith.constant 1.000000e+00 : f32
    %12 = vector.broadcast %cst_7 : f32 to vector<16x256xf32>
    %13 = arith.addf %12, %11 : vector<16x256xf32>
    %14 = arith.mulf %8, %13 : vector<16x256xf32>
    %15 = vector.extract_strided_slice %5 {offsets = [0, 256], sizes = [16, 256], strides = [1, 1]} : vector<16x512xf32> to vector<16x256xf32>
    %c0_8 = arith.constant 0 : index
    %c0_9 = arith.constant 0 : index
    %16 = vector.load %arg4[%c0_8, %c0_9] : memref<256x256xf32, #tpu.memory_space<vmem>>, vector<256x256xf32>
    %cst_10 = arith.constant dense<0.000000e+00> : vector<16x256xf32>
    %17 = tpu.matmul %14, %16, %cst_10 {dimension_numbers = #tpu.dot_dimension_numbers<[1], [0], [0], [1], [0, 0, 1, 1], [], []>} : vector<16x256xf32>, vector<256x256xf32>, vector<16x256xf32> -> vector<16x256xf32>
    %c0_11 = arith.constant 0 : index
    %c0_12 = arith.constant 0 : index
    %18 = vector.load %arg5[%c0_11, %c0_12] : memref<1x256xf32, #tpu.memory_space<vmem>>, vector<1x256xf32>
    %19 = vector.broadcast %18 : vector<1x256xf32> to vector<16x256xf32>
    %20 = arith.addf %17, %19 : vector<16x256xf32>
    %cst_13 = arith.constant 5.000000e-01 : f32
    %21 = vector.broadcast %cst_13 : f32 to vector<16x256xf32>
    %22 = arith.mulf %21, %20 : vector<16x256xf32>
    %cst_14 = arith.constant 0.707106769 : f32
    %23 = vector.broadcast %cst_14 : f32 to vector<16x256xf32>
    %24 = arith.mulf %20, %23 : vector<16x256xf32>
    %25 = math.erf %24 : vector<16x256xf32>
    %cst_15 = arith.constant 1.000000e+00 : f32
    %26 = vector.broadcast %cst_15 : f32 to vector<16x256xf32>
    %27 = arith.addf %26, %25 : vector<16x256xf32>
    %28 = arith.mulf %22, %27 : vector<16x256xf32>
    %c0_16 = arith.constant 0 : index
    %c0_17 = arith.constant 0 : index
    %29 = vector.load %arg6[%c0_16, %c0_17] : memref<256x256xf32, #tpu.memory_space<vmem>>, vector<256x256xf32>
    %cst_18 = arith.constant dense<0.000000e+00> : vector<16x256xf32>
    %30 = tpu.matmul %28, %29, %cst_18 {dimension_numbers = #tpu.dot_dimension_numbers<[1], [0], [0], [1], [0, 0, 1, 1], [], []>} : vector<16x256xf32>, vector<256x256xf32>, vector<16x256xf32> -> vector<16x256xf32>
    %c0_19 = arith.constant 0 : index
    %c0_20 = arith.constant 0 : index
    %31 = vector.load %arg7[%c0_19, %c0_20] : memref<1x256xf32, #tpu.memory_space<vmem>>, vector<1x256xf32>
    %32 = vector.broadcast %31 : vector<1x256xf32> to vector<16x256xf32>
    %33 = arith.addf %30, %32 : vector<16x256xf32>
    %34 = math.cos %15 : vector<16x256xf32>
    %35 = arith.addf %33, %34 : vector<16x256xf32>
    %36 = arith.truncf %35 : vector<16x256xf32> to vector<16x256xbf16>
    %c0_21 = arith.constant 0 : index
    %c0_22 = arith.constant 0 : index
    %37 = vector.load %arg8[%c0_21, %c0_22] : memref<16x256xbf16, #tpu.memory_space<vmem>>, vector<16x256xbf16>
    tpu.vector_store %arg8[%c0_21, %c0_22], %36 {strides = array<i32>} : memref<16x256xbf16, #tpu.memory_space<vmem>>, vector<16x256xbf16>,
    return
  }
  func.func @transform_0(%arg0: i32) -> (i32, i32) {
    %c0_i32 = arith.constant 0 : i32
    %c0_i32_0 = arith.constant 0 : i32
    return %arg0, %c0_i32 : i32, i32
  }
  func.func @transform_1(%arg0: i32) -> (i32, i32) {
    %c0_i32 = arith.constant 0 : i32
    %c0_i32_0 = arith.constant 0 : i32
    %c0_i32_1 = arith.constant 0 : i32
    return %c0_i32, %c0_i32_0 : i32, i32
  }
  func.func @transform_2(%arg0: i32) -> (i32, i32) {
    %c0_i32 = arith.constant 0 : i32
    %c0_i32_0 = arith.constant 0 : i32
    %c0_i32_1 = arith.constant 0 : i32
    return %c0_i32, %c0_i32_0 : i32, i32
  }
  func.func @transform_3(%arg0: i32) -> (i32, i32) {
    %c0_i32 = arith.constant 0 : i32
    %c0_i32_0 = arith.constant 0 : i32
    %c0_i32_1 = arith.constant 0 : i32
    return %c0_i32, %c0_i32_0 : i32, i32
  }
  func.func @transform_4(%arg0: i32) -> (i32, i32) {
    %c0_i32 = arith.constant 0 : i32
    %c0_i32_0 = arith.constant 0 : i32
    %c0_i32_1 = arith.constant 0 : i32
    return %c0_i32, %c0_i32_0 : i32, i32
  }
  func.func @transform_5(%arg0: i32) -> (i32, i32) {
    %c0_i32 = arith.constant 0 : i32
    %c0_i32_0 = arith.constant 0 : i32
    %c0_i32_1 = arith.constant 0 : i32
    return %c0_i32, %c0_i32_0 : i32, i32
  }
  func.func @transform_6(%arg0: i32) -> (i32, i32) {
    %c0_i32 = arith.constant 0 : i32
    %c0_i32_0 = arith.constant 0 : i32
    %c0_i32_1 = arith.constant 0 : i32
    return %c0_i32, %c0_i32_0 : i32, i32
  }
  func.func @transform_7(%arg0: i32) -> (i32, i32) {
    %c0_i32 = arith.constant 0 : i32
    %c0_i32_0 = arith.constant 0 : i32
    return %arg0, %c0_i32 : i32, i32
  }
}

</mosaic_0001>

<llo_original>
// kernel: tpu_custom_call.1
$region0: #{tpu_custom_call.1}
  #allocation0 [shape = 'u32[]', space=smem, size = 0x4, offset = 0x4, fixed_abs, tag = 'smem constant byte address 0x4 - core index']
  #allocation1 [shape = 'u32[144,128]{1,0:T(1,128)}', space=vmem, size = 0x12000, scoped, tag = 'internal scratch']
  %s0 = inlined_call_operand.hbm [shape: f32[16,48], index: 0, kind: input, shape index: {}]
  %s1 = inlined_call_operand.hbm [shape: f32[48,512], index: 1, kind: input, shape index: {}]
  %s2 = inlined_call_operand.hbm [shape: f32[1,512], index: 2, kind: input, shape index: {}]
  %s3 = inlined_call_operand.hbm [shape: f32[256,256], index: 3, kind: input, shape index: {}]
  %s4 = inlined_call_operand.vmem [shape: f32[1,256], index: 4, kind: input, shape index: {}]
  %s5 = inlined_call_operand.hbm [shape: f32[256,256], index: 5, kind: input, shape index: {}]
  %s6 = inlined_call_operand.vmem [shape: f32[1,256], index: 6, kind: input, shape index: {}]
  %s7 = inlined_call_operand.hbm [shape: bf16[16,256], index: 7, kind: output, shape index: {}]
  %s8 = sld [smem:[#allocation0]]
  $region58: #{tpu_custom_call.1} parent=0
    _
  %s10 = ssub.s32 1, %s8
  %s11 = scalar_select 0, %s10, %s8
  $region1: #{tpu_custom_call.1} parent=0
    #allocation2 [shape = 'u8[8192]{0}', space=vmem, size = 0x2000, scoped, tag = 'input window, operand 0, single buffered']
    #allocation3 [shape = 's32[1]{0}', space=sflag, size = 0x4, scoped, tag = 'scoped memory for tpu_custom_call.1']
    #allocation4 [shape = 's32[1]{0}', space=sflag, size = 0x4, scoped, tag = 'scoped memory for tpu_custom_call.1']
    #allocation5 [shape = 'u8[98304]{0}', space=vmem, size = 0x18000, scoped, tag = 'input window, operand 1, single buffered']
    #allocation6 [shape = 's32[1]{0}', space=sflag, size = 0x4, scoped, tag = 'scoped memory for tpu_custom_call.1']
    #allocation7 [shape = 'u8[2048]{0}', space=vmem, size = 0x800, scoped, tag = 'input window, operand 2, single buffered']
    #allocation8 [shape = 'u8[262144]{0}', space=vmem, size = 0x40000, scoped, tag = 'input window, operand 3, single buffered']
    #allocation9 [shape = 's32[1]{0}', space=sflag, size = 0x4, scoped, tag = 'scoped memory for tpu_custom_call.1']
    #allocation10 [shape = 'u8[262144]{0}', space=vmem, size = 0x40000, scoped, tag = 'input window, operand 5, single buffered']
    #allocation11 [shape = 'u8[8192]{0}', space=vmem, size = 0x2000, scoped, tag = 'output window, operand 0, single buffered']
    %12 = vsyncpa [#allocation3], 0
    %13 = vsyncpa [#allocation6], 0
    %14 = vsyncpa [#allocation9], 0
    %15 = vsyncpa [#allocation4], 0
    // Predicated region
    $region2: #{tpu_custom_call.1} parent=1 // pred_check
      _
    $region3: #{tpu_custom_call.1} parent=1 // pred_check_branch
      %17 = sbr.rel (0) target = $region5
    $region4: #{tpu_custom_call.1} parent=1 // pred_region
      %s19 = ssub.s32 256, 256
      %20 = vsyncadd [#allocation3], %s19
      %s21 = sshll.u32 [#allocation2], 4
      %s22 = int_to_ptr.vmem [resolvable:$true] %s21
      %27 = dma.hbm_to_vmem [thread:$0]  %s0, 256, %s22, [#allocation3], 128, 128, 8
    $region5: #{tpu_custom_call.1} parent=1 // pred_fallthru
      _
    // Predicated region
    $region6: #{tpu_custom_call.1} parent=1 // pred_check
      _
    $region7: #{tpu_custom_call.1} parent=1 // pred_check_branch
      %29 = sbr.rel (0) target = $region9
    $region8: #{tpu_custom_call.1} parent=1 // pred_region
      %s31 = ssub.s32 3072, 3072
      %32 = vsyncadd [#allocation6], %s31
      %s33 = sshll.u32 [#allocation5], 4
      %s34 = int_to_ptr.vmem [resolvable:$true] %s33
      %39 = dma.hbm_to_vmem [thread:$0]  %s1, 3072, %s34, [#allocation6], 512, 512, 32
    $region9: #{tpu_custom_call.1} parent=1 // pred_fallthru
      _
    // Predicated region
    $region10: #{tpu_custom_call.1} parent=1 // pred_check
      _
    $region11: #{tpu_custom_call.1} parent=1 // pred_check_branch
      %41 = sbr.rel (0) target = $region13
    $region12: #{tpu_custom_call.1} parent=1 // pred_region
      %s43 = ssub.s32 64, 64
      %44 = vsyncadd [#allocation6], %s43
      %s46 = sshll.u32 [#allocation7], 4
      %s47 = int_to_ptr.vmem [resolvable:$true] %s46
      %49 = dma.hbm_to_vmem [thread:$0]  %s2, 64, %s47, [#allocation6]
    $region13: #{tpu_custom_call.1} parent=1 // pred_fallthru
      _
    // Predicated region
    $region14: #{tpu_custom_call.1} parent=1 // pred_check
      _
    $region15: #{tpu_custom_call.1} parent=1 // pred_check_branch
      %51 = sbr.rel (0) target = $region17
    $region16: #{tpu_custom_call.1} parent=1 // pred_region
      %s53 = ssub.s32 8192, 8192
      %54 = vsyncadd [#allocation9], %s53
      %s55 = sshll.u32 [#allocation8], 4
      %s56 = int_to_ptr.vmem [resolvable:$true] %s55
      %61 = dma.hbm_to_vmem [thread:$0]  %s3, 8192, %s56, [#allocation9], 256, 256, 16
    $region17: #{tpu_custom_call.1} parent=1 // pred_fallthru
      _
    // Predicated region
    $region18: #{tpu_custom_call.1} parent=1 // pred_check
      _
    $region19: #{tpu_custom_call.1} parent=1 // pred_check_branch
      %63 = sbr.rel (0) target = $region21
    $region20: #{tpu_custom_call.1} parent=1 // pred_region
      _
    $region21: #{tpu_custom_call.1} parent=1 // pred_fallthru
      _
    // Predicated region
    $region22: #{tpu_custom_call.1} parent=1 // pred_check
      _
    $region23: #{tpu_custom_call.1} parent=1 // pred_check_branch
      %65 = sbr.rel (0) target = $region25
    $region24: #{tpu_custom_call.1} parent=1 // pred_region
      %s67 = ssub.s32 8192, 8192
      %68 = vsyncadd [#allocation9], %s67
      %s69 = sshll.u32 [#allocation10], 4
      %s70 = int_to_ptr.vmem [resolvable:$true] %s69
      %75 = dma.hbm_to_vmem [thread:$0]  %s5, 8192, %s70, [#allocation9], 256, 256, 16
    $region25: #{tpu_custom_call.1} parent=1 // pred_fallthru
      _
    // Predicated region
    $region26: #{tpu_custom_call.1} parent=1 // pred_check
      _
    $region27: #{tpu_custom_call.1} parent=1 // pred_check_branch
      %77 = sbr.rel (0) target = $region29
    $region28: #{tpu_custom_call.1} parent=1 // pred_region
      _
    $region29: #{tpu_custom_call.1} parent=1 // pred_fallthru
      _
    // Predicated region
    $region30: #{tpu_custom_call.1} parent=1 // pred_check
      _
    $region31: #{tpu_custom_call.1} parent=1 // pred_check_branch
      %79 = sbr.rel (0) target = $region33
    $region32: #{tpu_custom_call.1} parent=1 // pred_region
      %80 = dma.done [#allocation3], 256
    $region33: #{tpu_custom_call.1} parent=1 // pred_fallthru
      _
    // Predicated region
    $region34: #{tpu_custom_call.1} parent=1 // pred_check
      _
    $region35: #{tpu_custom_call.1} parent=1 // pred_check_branch
      %82 = sbr.rel (0) target = $region37
    $region36: #{tpu_custom_call.1} parent=1 // pred_region
      %83 = dma.done [#allocation6], 3072
    $region37: #{tpu_custom_call.1} parent=1 // pred_fallthru
      _
    // Predicated region
    $region38: #{tpu_custom_call.1} parent=1 // pred_check
      _
    $region39: #{tpu_custom_call.1} parent=1 // pred_check_branch
      %85 = sbr.rel (0) target = $region41
    $region40: #{tpu_custom_call.1} parent=1 // pred_region
      %86 = dma.done [#allocation6], 64
    $region41: #{tpu_custom_call.1} parent=1 // pred_fallthru
      _
    // Predicated region
    $region42: #{tpu_custom_call.1} parent=1 // pred_check
      _
    $region43: #{tpu_custom_call.1} parent=1 // pred_check_branch
      %88 = sbr.rel (0) target = $region45
    $region44: #{tpu_custom_call.1} parent=1 // pred_region
      %89 = dma.done [#allocation9], 8192
    $region45: #{tpu_custom_call.1} parent=1 // pred_fallthru
      _
    // Predicated region
    $region46: #{tpu_custom_call.1} parent=1 // pred_check
      _
    $region47: #{tpu_custom_call.1} parent=1 // pred_check_branch
      %91 = sbr.rel (0) target = $region49
    $region48: #{tpu_custom_call.1} parent=1 // pred_region
      %92 = dma.done [#allocation9], 8192
    $region49: #{tpu_custom_call.1} parent=1 // pred_fallthru
      _
    %v93 = vld [vmem:[#allocation2] sm:$0xff]
    %v94 = vld [vmem:[#allocation2 + $0x8] sm:$0xff]
    %v95 = vld [vmem:[#allocation5] sm:$0xff]
    %v96 = vld [vmem:[#allocation5 + $0x8] sm:$0xff]
    %v97 = vld [vmem:[#allocation5 + $0x10] sm:$0xff]
    %v98 = vld [vmem:[#allocation5 + $0x18] sm:$0xff]
    %v99 = vld [vmem:[#allocation5 + $0x20] sm:$0xff]
    %v100 = vld [vmem:[#allocation5 + $0x28] sm:$0xff]
    %v101 = vld [vmem:[#allocation5 + $0x30] sm:$0xff]
    %v102 = vld [vmem:[#allocation5 + $0x38] sm:$0xff]
    %v103 = vld [vmem:[#allocation5 + $0x40] sm:$0xff]
    %v104 = vld [vmem:[#allocation5 + $0x48] sm:$0xff]
    %v105 = vld [vmem:[#allocation5 + $0x50] sm:$0xff]
    %v106 = vld [vmem:[#allocation5 + $0x58] sm:$0xff]
    %v107 = vld [vmem:[#allocation5 + $0x60] sm:$0xff]
    %v108 = vld [vmem:[#allocation5 + $0x68] sm:$0xff]
    %v109 = vld [vmem:[#allocation5 + $0x70] sm:$0xff]
    %v110 = vld [vmem:[#allocation5 + $0x78] sm:$0xff]
    %v111 = vld [vmem:[#allocation5 + $0x80] sm:$0xff]
    %v112 = vld [vmem:[#allocation5 + $0x88] sm:$0xff]
    %v113 = vld [vmem:[#allocation5 + $0x90] sm:$0xff]
    %v114 = vld [vmem:[#allocation5 + $0x98] sm:$0xff]
    %v115 = vld [vmem:[#allocation5 + $0xa0] sm:$0xff]
    %v116 = vld [vmem:[#allocation5 + $0xa8] sm:$0xff]
    %v117 = vld [vmem:[#allocation5 + $0xb0] sm:$0xff]
    %v118 = vld [vmem:[#allocation5 + $0xb8] sm:$0xff]
    %v119 = vld [vmem:[#allocation7] sm:$0xf]
    %v121 = vlaneseq
    %v122 = vshrl.u32 %v121, 7
    %v123 = vsub.s32 0, %v122
    %v124 = vrot.slane %v119, %v123
    %v125 = vlaneseq
    %v126 = vshrl.u32 %v125, 7
    %v127 = vsub.s32 1, %v126
    %v128 = vrot.slane %v119, %v127
    %v129 = vlaneseq
    %v130 = vshrl.u32 %v129, 7
    %v131 = vsub.s32 2, %v130
    %v132 = vrot.slane %v119, %v131
    %v133 = vlaneseq
    %v134 = vshrl.u32 %v133, 7
    %v135 = vsub.s32 3, %v134
    %v136 = vrot.slane %v119, %v135
    %vm141 = vcmask 392192
    %v143 = vsel %vm141, %v93, 0
    %v146 = vsel %vm141, %v94, 0
    %148 = vmatprep.subr.mxu0 0.0
    %149 = vmatpush1.msra.mxu0 0.0
    %150 = vmatprep.subr.mxu0 0.0
    %151 = vmatpush1.msra.mxu0 0.0
    %152 = vmatprep.subr.mxu0 0.0
    %153 = vmatpush1.msra.mxu0 0.0
    %154 = vmatprep.subr.mxu0 0.0
    %155 = vmatpush1.msra.mxu0 0.0
    %156 = vmatprep.subr.mxu0 0.0
    %157 = vmatpush1.msra.mxu0 0.0
    %158 = vmatprep.subr.mxu0 0.0
    %159 = vmatpush1.msra.mxu0 0.0
    %160 = vmatprep.subr.mxu0 0.0
    %161 = vmatpush1.msra.mxu0 0.0
    %162 = vmatprep.subr.mxu0 0.0
    %163 = vmatpush1.msra.mxu0 0.0
    %164 = vmatprep.subr.mxu0 0.0
    %165 = vmatpush1.msra.mxu0 0.0
    %166 = vmatprep.subr.mxu0 0.0
    %167 = vmatpush1.msra.mxu0 0.0
    %168 = vmatprep.subr.mxu0 %v116
    %169 = vmatpush1.msra.mxu0 %v115
    %170 = vmatprep.subr.mxu0 %v112
    %171 = vmatpush1.msra.mxu0 %v111
    %172 = vmatprep.subr.mxu0 %v108
    %173 = vmatpush1.msra.mxu0 %v107
    %174 = vmatprep.subr.mxu0 %v104
    %175 = vmatpush1.msra.mxu0 %v103
    %176 = vmatprep.subr.mxu0 %v100
    %177 = vmatpush1.msra.mxu0 %v99
    %178 = vmatprep.subr.mxu0 %v96
    %179 = vmatpush1.msra.mxu0 %v95
    %180 = vmatprep.subr.mxu0 0.0
    %181 = vmatpush2.msra.mxu0 0.0
    %182 = vmatprep.subr.mxu0 0.0
    %183 = vmatpush2.msra.mxu0 0.0
    %184 = vmatprep.subr.mxu0 0.0
    %185 = vmatpush2.msra.mxu0 0.0
    %186 = vmatprep.subr.mxu0 0.0
    %187 = vmatpush2.msra.mxu0 0.0
    %188 = vmatprep.subr.mxu0 0.0
    %189 = vmatpush2.msra.mxu0 0.0
    %190 = vmatprep.subr.mxu0 0.0
    %191 = vmatpush2.msra.mxu0 0.0
    %192 = vmatprep.subr.mxu0 0.0
    %193 = vmatpush2.msra.mxu0 0.0
    %194 = vmatprep.subr.mxu0 0.0
    %195 = vmatpush2.msra.mxu0 0.0
    %196 = vmatprep.subr.mxu0 0.0
    %197 = vmatpush2.msra.mxu0 0.0
    %198 = vmatprep.subr.mxu0 0.0
    %199 = vmatpush2.msra.mxu0 0.0
    %200 = vmatprep.subr.mxu0 0.0
    %201 = vmatpush2.msra.mxu0 0.0
    %202 = vmatprep.subr.mxu0 0.0
    %203 = vmatpush2.msra.mxu0 0.0
    %204 = vmatprep.subr.mxu0 0.0
    %205 = vmatpush2.msra.mxu0 0.0
    %206 = vmatprep.subr.mxu0 0.0
    %207 = vmatpush2.msra.mxu0 0.0
    %208 = vmatprep.subr.mxu0 0.0
    %209 = vmatpush2.msra.mxu0 0.0
    %210 = vmatprep.subr.mxu0 0.0
    %211 = vmatpush2.msra.mxu0 0.0
    %212 = vmatprep.mubr.f32.mxu0 0.0
    %213 = vmatmul.mubr.f32.gmra.mxu0 %v143
    %v214 = vpop.f32.mrf.mxu0
    %v215 = vadd.f32 %v124, %v214
    %v216 = vpop.f32.mrf.mxu0
    %v217 = vadd.f32 %v128, %v216
    %218 = vmatprep.mubr.f32.mxu0 0.0
    %219 = vmatmul.mubr.f32.gmra.mxu0 %v146
    %v220 = vpop.f32.mrf.mxu0
    %v221 = vadd.f32 %v124, %v220
    %v222 = vpop.f32.mrf.mxu0
    %v223 = vadd.f32 %v128, %v222
    %224 = vdwg.mxu0
    %225 = vmatprep.subr.mxu0 0.0
    %226 = vmatpush1.msra.mxu0 0.0
    %227 = vmatprep.subr.mxu0 0.0
    %228 = vmatpush1.msra.mxu0 0.0
    %229 = vmatprep.subr.mxu0 0.0
    %230 = vmatpush1.msra.mxu0 0.0
    %231 = vmatprep.subr.mxu0 0.0
    %232 = vmatpush1.msra.mxu0 0.0
    %233 = vmatprep.subr.mxu0 0.0
    %234 = vmatpush1.msra.mxu0 0.0
    %235 = vmatprep.subr.mxu0 0.0
    %236 = vmatpush1.msra.mxu0 0.0
    %237 = vmatprep.subr.mxu0 0.0
    %238 = vmatpush1.msra.mxu0 0.0
    %239 = vmatprep.subr.mxu0 0.0
    %240 = vmatpush1.msra.mxu0 0.0
    %241 = vmatprep.subr.mxu0 0.0
    %242 = vmatpush1.msra.mxu0 0.0
    %243 = vmatprep.subr.mxu0 0.0
    %244 = vmatpush1.msra.mxu0 0.0
    %245 = vmatprep.subr.mxu0 %v118
    %246 = vmatpush1.msra.mxu0 %v117
    %247 = vmatprep.subr.mxu0 %v114
    %248 = vmatpush1.msra.mxu0 %v113
    %249 = vmatprep.subr.mxu0 %v110
    %250 = vmatpush1.msra.mxu0 %v109
    %251 = vmatprep.subr.mxu0 %v106
    %252 = vmatpush1.msra.mxu0 %v105
    %253 = vmatprep.subr.mxu0 %v102
    %254 = vmatpush1.msra.mxu0 %v101
    %255 = vmatprep.subr.mxu0 %v98
    %256 = vmatpush1.msra.mxu0 %v97
    %257 = vmatprep.subr.mxu0 0.0
    %258 = vmatpush2.msra.mxu0 0.0
    %259 = vmatprep.subr.mxu0 0.0
    %260 = vmatpush2.msra.mxu0 0.0
    %261 = vmatprep.subr.mxu0 0.0
    %262 = vmatpush2.msra.mxu0 0.0
    %263 = vmatprep.subr.mxu0 0.0
    %264 = vmatpush2.msra.mxu0 0.0
    %265 = vmatprep.subr.mxu0 0.0
    %266 = vmatpush2.msra.mxu0 0.0
    %267 = vmatprep.subr.mxu0 0.0
    %268 = vmatpush2.msra.mxu0 0.0
    %269 = vmatprep.subr.mxu0 0.0
    %270 = vmatpush2.msra.mxu0 0.0
    %271 = vmatprep.subr.mxu0 0.0
    %272 = vmatpush2.msra.mxu0 0.0
    %273 = vmatprep.subr.mxu0 0.0
    %274 = vmatpush2.msra.mxu0 0.0
    %275 = vmatprep.subr.mxu0 0.0
    %276 = vmatpush2.msra.mxu0 0.0
    %277 = vmatprep.subr.mxu0 0.0
    %278 = vmatpush2.msra.mxu0 0.0
    %279 = vmatprep.subr.mxu0 0.0
    %280 = vmatpush2.msra.mxu0 0.0
    %281 = vmatprep.subr.mxu0 0.0
    %282 = vmatpush2.msra.mxu0 0.0
    %283 = vmatprep.subr.mxu0 0.0
    %284 = vmatpush2.msra.mxu0 0.0
    %285 = vmatprep.subr.mxu0 0.0
    %286 = vmatpush2.msra.mxu0 0.0
    %287 = vmatprep.subr.mxu0 0.0
    %288 = vmatpush2.msra.mxu0 0.0
    %289 = vmatprep.mubr.f32.mxu0 0.0
    %290 = vmatmul.mubr.f32.gmra.mxu0 %v143
    %v291 = vpop.f32.mrf.mxu0
    %v292 = vadd.f32 %v132, %v291
    %v293 = vpop.f32.mrf.mxu0
    %v294 = vadd.f32 %v136, %v293
    %295 = vmatprep.mubr.f32.mxu0 0.0
    %296 = vmatmul.mubr.f32.gmra.mxu0 %v146
    %v297 = vpop.f32.mrf.mxu0
    %v298 = vadd.f32 %v132, %v297
    %v299 = vpop.f32.mrf.mxu0
    %v300 = vadd.f32 %v136, %v299
    %301 = vdwg.mxu0
    %v302 = vmul.f32 %v215, 0.5
    %v303 = vmul.f32 %v217, 0.5
    %v304 = vmul.f32 %v221, 0.5
    %v305 = vmul.f32 %v223, 0.5
    %v306 = vmul.f32 %v215, 0.70710677
    %v307 = vmul.f32 %v217, 0.70710677
    %v308 = vmul.f32 %v221, 0.70710677
    %v309 = vmul.f32 %v223, 0.70710677
    %v310 = verf.f32.pop %v306
    %v311 = verf.f32.pop %v307
    %v312 = verf.f32.pop %v308
    %v313 = verf.f32.pop %v309
    %v314 = vadd.f32 %v310, 1.0
    %v315 = vadd.f32 %v311, 1.0
    %v316 = vadd.f32 %v312, 1.0
    %v317 = vadd.f32 %v313, 1.0
    %v318 = vmul.f32 %v302, %v314
    %v319 = vmul.f32 %v303, %v315
    %v320 = vmul.f32 %v304, %v316
    %v321 = vmul.f32 %v305, %v317
    %v322 = vld [vmem:[#allocation8] sm:$0xff]
    %v323 = vld [vmem:[#allocation8 + $0x8] sm:$0xff]
    %v324 = vld [vmem:[#allocation8 + $0x10] sm:$0xff]
    %v325 = vld [vmem:[#allocation8 + $0x18] sm:$0xff]
    %v326 = vld [vmem:[#allocation8 + $0x20] sm:$0xff]
    %v327 = vld [vmem:[#allocation8 + $0x28] sm:$0xff]
    %v328 = vld [vmem:[#allocation8 + $0x30] sm:$0xff]
    %v329 = vld [vmem:[#allocation8 + $0x38] sm:$0xff]
    %v330 = vld [vmem:[#allocation8 + $0x40] sm:$0xff]
    %v331 = vld [vmem:[#allocation8 + $0x48] sm:$0xff]
    %v332 = vld [vmem:[#allocation8 + $0x50] sm:$0xff]
    %v333 = vld [vmem:[#allocation8 + $0x58] sm:$0xff]
    %v334 = vld [vmem:[#allocation8 + $0x60] sm:$0xff]
    %v335 = vld [vmem:[#allocation8 + $0x68] sm:$0xff]
    %v336 = vld [vmem:[#allocation8 + $0x70] sm:$0xff]
    %v337 = vld [vmem:[#allocation8 + $0x78] sm:$0xff]
    %v338 = vld [vmem:[#allocation8 + $0x80] sm:$0xff]
    %v339 = vld [vmem:[#allocation8 + $0x88] sm:$0xff]
    %v340 = vld [vmem:[#allocation8 + $0x90] sm:$0xff]
    %v341 = vld [vmem:[#allocation8 + $0x98] sm:$0xff]
    %v342 = vld [vmem:[#allocation8 + $0xa0] sm:$0xff]
    %v343 = vld [vmem:[#allocation8 + $0xa8] sm:$0xff]
    %v344 = vld [vmem:[#allocation8 + $0xb0] sm:$0xff]
    %v345 = vld [vmem:[#allocation8 + $0xb8] sm:$0xff]
    %v346 = vld [vmem:[#allocation8 + $0xc0] sm:$0xff]
    %v347 = vld [vmem:[#allocation8 + $0xc8] sm:$0xff]
    %v348 = vld [vmem:[#allocation8 + $0xd0] sm:$0xff]
    %v349 = vld [vmem:[#allocation8 + $0xd8] sm:$0xff]
    %v350 = vld [vmem:[#allocation8 + $0xe0] sm:$0xff]
    %v351 = vld [vmem:[#allocation8 + $0xe8] sm:$0xff]
    %v352 = vld [vmem:[#allocation8 + $0xf0] sm:$0xff]
    %v353 = vld [vmem:[#allocation8 + $0xf8] sm:$0xff]
    %v354 = vld [vmem:[#allocation8 + $0x100] sm:$0xff]
    %v355 = vld [vmem:[#allocation8 + $0x108] sm:$0xff]
    %v356 = vld [vmem:[#allocation8 + $0x110] sm:$0xff]
    %v357 = vld [vmem:[#allocation8 + $0x118] sm:$0xff]
    %v358 = vld [vmem:[#allocation8 + $0x120] sm:$0xff]
    %v359 = vld [vmem:[#allocation8 + $0x128] sm:$0xff]
    %v360 = vld [vmem:[#allocation8 + $0x130] sm:$0xff]
    %v361 = vld [vmem:[#allocation8 + $0x138] sm:$0xff]
    %v362 = vld [vmem:[#allocation8 + $0x140] sm:$0xff]
    %v363 = vld [vmem:[#allocation8 + $0x148] sm:$0xff]
    %v364 = vld [vmem:[#allocation8 + $0x150] sm:$0xff]
    %v365 = vld [vmem:[#allocation8 + $0x158] sm:$0xff]
    %v366 = vld [vmem:[#allocation8 + $0x160] sm:$0xff]
    %v367 = vld [vmem:[#allocation8 + $0x168] sm:$0xff]
    %v368 = vld [vmem:[#allocation8 + $0x170] sm:$0xff]
    %v369 = vld [vmem:[#allocation8 + $0x178] sm:$0xff]
    %v370 = vld [vmem:[#allocation8 + $0x180] sm:$0xff]
    %v371 = vld [vmem:[#allocation8 + $0x188] sm:$0xff]
    %v372 = vld [vmem:[#allocation8 + $0x190] sm:$0xff]
    %v373 = vld [vmem:[#allocation8 + $0x198] sm:$0xff]
    %v374 = vld [vmem:[#allocation8 + $0x1a0] sm:$0xff]
    %v375 = vld [vmem:[#allocation8 + $0x1a8] sm:$0xff]
    %v376 = vld [vmem:[#allocation8 + $0x1b0] sm:$0xff]
    %v377 = vld [vmem:[#allocation8 + $0x1b8] sm:$0xff]
    %v378 = vld [vmem:[#allocation8 + $0x1c0] sm:$0xff]
    %v379 = vld [vmem:[#allocation8 + $0x1c8] sm:$0xff]
    %v380 = vld [vmem:[#allocation8 + $0x1d0] sm:$0xff]
    %v381 = vld [vmem:[#allocation8 + $0x1d8] sm:$0xff]
    %v382 = vld [vmem:[#allocation8 + $0x1e0] sm:$0xff]
    %v383 = vld [vmem:[#allocation8 + $0x1e8] sm:$0xff]
    %v384 = vld [vmem:[#allocation8 + $0x1f0] sm:$0xff]
    %v385 = vld [vmem:[#allocation8 + $0x1f8] sm:$0xff]
    %v386 = vld [vmem:[%s4] sm:$0x3]
    %v388 = vlaneseq
    %v389 = vshrl.u32 %v388, 7
    %v390 = vsub.s32 0, %v389
    %v391 = vrot.slane %v386, %v390
    %v392 = vlaneseq
    %v393 = vshrl.u32 %v392, 7
    %v394 = vsub.s32 1, %v393
    %v395 = vrot.slane %v386, %v394
    %398 = vmatprep.subr.mxu0 %v353
    %399 = vmatpush1.msra.mxu0 %v352
    %400 = vmatprep.subr.mxu0 %v351
    %401 = vmatpush1.msra.mxu0 %v350
    %402 = vmatprep.subr.mxu0 %v349
    %403 = vmatpush1.msra.mxu0 %v348
    %404 = vmatprep.subr.mxu0 %v347
    %405 = vmatpush1.msra.mxu0 %v346
    %406 = vmatprep.subr.mxu0 %v345
    %407 = vmatpush1.msra.mxu0 %v344
    %408 = vmatprep.subr.mxu0 %v343
    %409 = vmatpush1.msra.mxu0 %v342
    %410 = vmatprep.subr.mxu0 %v341
    %411 = vmatpush1.msra.mxu0 %v340
    %412 = vmatprep.subr.mxu0 %v339
    %413 = vmatpush1.msra.mxu0 %v338
    %414 = vmatprep.subr.mxu0 %v337
    %415 = vmatpush1.msra.mxu0 %v336
    %416 = vmatprep.subr.mxu0 %v335
    %417 = vmatpush1.msra.mxu0 %v334
    %418 = vmatprep.subr.mxu0 %v333
    %419 = vmatpush1.msra.mxu0 %v332
    %420 = vmatprep.subr.mxu0 %v331
    %421 = vmatpush1.msra.mxu0 %v330
    %422 = vmatprep.subr.mxu0 %v329
    %423 = vmatpush1.msra.mxu0 %v328
    %424 = vmatprep.subr.mxu0 %v327
    %425 = vmatpush1.msra.mxu0 %v326
    %426 = vmatprep.subr.mxu0 %v325
    %427 = vmatpush1.msra.mxu0 %v324
    %428 = vmatprep.subr.mxu0 %v323
    %429 = vmatpush1.msra.mxu0 %v322
    %430 = vmatprep.subr.mxu0 %v385
    %431 = vmatpush2.msra.mxu0 %v384
    %432 = vmatprep.subr.mxu0 %v383
    %433 = vmatpush2.msra.mxu0 %v382
    %434 = vmatprep.subr.mxu0 %v381
    %435 = vmatpush2.msra.mxu0 %v380
    %436 = vmatprep.subr.mxu0 %v379
    %437 = vmatpush2.msra.mxu0 %v378
    %438 = vmatprep.subr.mxu0 %v377
    %439 = vmatpush2.msra.mxu0 %v376
    %440 = vmatprep.subr.mxu0 %v375
    %441 = vmatpush2.msra.mxu0 %v374
    %442 = vmatprep.subr.mxu0 %v373
    %443 = vmatpush2.msra.mxu0 %v372
    %444 = vmatprep.subr.mxu0 %v371
    %445 = vmatpush2.msra.mxu0 %v370
    %446 = vmatprep.subr.mxu0 %v369
    %447 = vmatpush2.msra.mxu0 %v368
    %448 = vmatprep.subr.mxu0 %v367
    %449 = vmatpush2.msra.mxu0 %v366
    %450 = vmatprep.subr.mxu0 %v365
    %451 = vmatpush2.msra.mxu0 %v364
    %452 = vmatprep.subr.mxu0 %v363
    %453 = vmatpush2.msra.mxu0 %v362
    %454 = vmatprep.subr.mxu0 %v361
    %455 = vmatpush2.msra.mxu0 %v360
    %456 = vmatprep.subr.mxu0 %v359
    %457 = vmatpush2.msra.mxu0 %v358
    %458 = vmatprep.subr.mxu0 %v357
    %459 = vmatpush2.msra.mxu0 %v356
    %460 = vmatprep.subr.mxu0 %v355
    %461 = vmatpush2.msra.mxu0 %v354
    %462 = vmatprep.mubr.f32.mxu0 %v319
    %463 = vmatmul.mubr.f32.gmra.mxu0 %v318
    %v464 = vpop.f32.mrf.mxu0
    %v465 = vadd.f32 %v391, %v464
    %v466 = vpop.f32.mrf.mxu0
    %v467 = vadd.f32 %v395, %v466
    %468 = vmatprep.mubr.f32.mxu0 %v321
    %469 = vmatmul.mubr.f32.gmra.mxu0 %v320
    %v470 = vpop.f32.mrf.mxu0
    %v471 = vadd.f32 %v391, %v470
    %v472 = vpop.f32.mrf.mxu0
    %v473 = vadd.f32 %v395, %v472
    %474 = vdwg.mxu0
    %v475 = vmul.f32 %v465, 0.5
    %v476 = vmul.f32 %v467, 0.5
    %v477 = vmul.f32 %v471, 0.5
    %v478 = vmul.f32 %v473, 0.5
    %v479 = vmul.f32 %v465, 0.70710677
    %v480 = vmul.f32 %v467, 0.70710677
    %v481 = vmul.f32 %v471, 0.70710677
    %v482 = vmul.f32 %v473, 0.70710677
    %v483 = verf.f32.pop %v479
    %v484 = verf.f32.pop %v480
    %v485 = verf.f32.pop %v481
    %v486 = verf.f32.pop %v482
    %v487 = vadd.f32 %v483, 1.0
    %v488 = vadd.f32 %v484, 1.0
    %v489 = vadd.f32 %v485, 1.0
    %v490 = vadd.f32 %v486, 1.0
    %v491 = vmul.f32 %v475, %v487
    %v492 = vmul.f32 %v476, %v488
    %v493 = vmul.f32 %v477, %v489
    %v494 = vmul.f32 %v478, %v490
    %v495 = vld [vmem:[#allocation10] sm:$0xff]
    %v496 = vld [vmem:[#allocation10 + $0x8] sm:$0xff]
    %v497 = vld [vmem:[#allocation10 + $0x10] sm:$0xff]
    %v498 = vld [vmem:[#allocation10 + $0x18] sm:$0xff]
    %v499 = vld [vmem:[#allocation10 + $0x20] sm:$0xff]
    %v500 = vld [vmem:[#allocation10 + $0x28] sm:$0xff]
    %v501 = vld [vmem:[#allocation10 + $0x30] sm:$0xff]
    %v502 = vld [vmem:[#allocation10 + $0x38] sm:$0xff]
    %v503 = vld [vmem:[#allocation10 + $0x40] sm:$0xff]
    %v504 = vld [vmem:[#allocation10 + $0x48] sm:$0xff]
    %v505 = vld [vmem:[#allocation10 + $0x50] sm:$0xff]
    %v506 = vld [vmem:[#allocation10 + $0x58] sm:$0xff]
    %v507 = vld [vmem:[#allocation10 + $0x60] sm:$0xff]
    %v508 = vld [vmem:[#allocation10 + $0x68] sm:$0xff]
    %v509 = vld [vmem:[#allocation10 + $0x70] sm:$0xff]
    %v510 = vld [vmem:[#allocation10 + $0x78] sm:$0xff]
    %v511 = vld [vmem:[#allocation10 + $0x80] sm:$0xff]
    %v512 = vld [vmem:[#allocation10 + $0x88] sm:$0xff]
    %v513 = vld [vmem:[#allocation10 + $0x90] sm:$0xff]
    %v514 = vld [vmem:[#allocation10 + $0x98] sm:$0xff]
    %v515 = vld [vmem:[#allocation10 + $0xa0] sm:$0xff]
    %v516 = vld [vmem:[#allocation10 + $0xa8] sm:$0xff]
    %v517 = vld [vmem:[#allocation10 + $0xb0] sm:$0xff]
    %v518 = vld [vmem:[#allocation10 + $0xb8] sm:$0xff]
    %v519 = vld [vmem:[#allocation10 + $0xc0] sm:$0xff]
    %v520 = vld [vmem:[#allocation10 + $0xc8] sm:$0xff]
    %v521 = vld [vmem:[#allocation10 + $0xd0] sm:$0xff]
    %v522 = vld [vmem:[#allocation10 + $0xd8] sm:$0xff]
    %v523 = vld [vmem:[#allocation10 + $0xe0] sm:$0xff]
    %v524 = vld [vmem:[#allocation10 + $0xe8] sm:$0xff]
    %v525 = vld [vmem:[#allocation10 + $0xf0] sm:$0xff]
    %v526 = vld [vmem:[#allocation10 + $0xf8] sm:$0xff]
    %v527 = vld [vmem:[#allocation10 + $0x100] sm:$0xff]
    %v528 = vld [vmem:[#allocation10 + $0x108] sm:$0xff]
    %v529 = vld [vmem:[#allocation10 + $0x110] sm:$0xff]
    %v530 = vld [vmem:[#allocation10 + $0x118] sm:$0xff]
    %v531 = vld [vmem:[#allocation10 + $0x120] sm:$0xff]
    %v532 = vld [vmem:[#allocation10 + $0x128] sm:$0xff]
    %v533 = vld [vmem:[#allocation10 + $0x130] sm:$0xff]
    %v534 = vld [vmem:[#allocation10 + $0x138] sm:$0xff]
    %v535 = vld [vmem:[#allocation10 + $0x140] sm:$0xff]
    %v536 = vld [vmem:[#allocation10 + $0x148] sm:$0xff]
    %v537 = vld [vmem:[#allocation10 + $0x150] sm:$0xff]
    %v538 = vld [vmem:[#allocation10 + $0x158] sm:$0xff]
    %v539 = vld [vmem:[#allocation10 + $0x160] sm:$0xff]
    %v540 = vld [vmem:[#allocation10 + $0x168] sm:$0xff]
    %v541 = vld [vmem:[#allocation10 + $0x170] sm:$0xff]
    %v542 = vld [vmem:[#allocation10 + $0x178] sm:$0xff]
    %v543 = vld [vmem:[#allocation10 + $0x180] sm:$0xff]
    %v544 = vld [vmem:[#allocation10 + $0x188] sm:$0xff]
    %v545 = vld [vmem:[#allocation10 + $0x190] sm:$0xff]
    %v546 = vld [vmem:[#allocation10 + $0x198] sm:$0xff]
    %v547 = vld [vmem:[#allocation10 + $0x1a0] sm:$0xff]
    %v548 = vld [vmem:[#allocation10 + $0x1a8] sm:$0xff]
    %v549 = vld [vmem:[#allocation10 + $0x1b0] sm:$0xff]
    %v550 = vld [vmem:[#allocation10 + $0x1b8] sm:$0xff]
    %v551 = vld [vmem:[#allocation10 + $0x1c0] sm:$0xff]
    %v552 = vld [vmem:[#allocation10 + $0x1c8] sm:$0xff]
    %v553 = vld [vmem:[#allocation10 + $0x1d0] sm:$0xff]
    %v554 = vld [vmem:[#allocation10 + $0x1d8] sm:$0xff]
    %v555 = vld [vmem:[#allocation10 + $0x1e0] sm:$0xff]
    %v556 = vld [vmem:[#allocation10 + $0x1e8] sm:$0xff]
    %v557 = vld [vmem:[#allocation10 + $0x1f0] sm:$0xff]
    %v558 = vld [vmem:[#allocation10 + $0x1f8] sm:$0xff]
    %v559 = vld [vmem:[%s6] sm:$0x3]
    %v561 = vlaneseq
    %v562 = vshrl.u32 %v561, 7
    %v563 = vsub.s32 0, %v562
    %v564 = vrot.slane %v559, %v563
    %v565 = vlaneseq
    %v566 = vshrl.u32 %v565, 7
    %v567 = vsub.s32 1, %v566
    %v568 = vrot.slane %v559, %v567
    %571 = vmatprep.subr.mxu0 %v526
    %572 = vmatpush1.msra.mxu0 %v525
    %573 = vmatprep.subr.mxu0 %v524
    %574 = vmatpush1.msra.mxu0 %v523
    %575 = vmatprep.subr.mxu0 %v522
    %576 = vmatpush1.msra.mxu0 %v521
    %577 = vmatprep.subr.mxu0 %v520
    %578 = vmatpush1.msra.mxu0 %v519
    %579 = vmatprep.subr.mxu0 %v518
    %580 = vmatpush1.msra.mxu0 %v517
    %581 = vmatprep.subr.mxu0 %v516
    %582 = vmatpush1.msra.mxu0 %v515
    %583 = vmatprep.subr.mxu0 %v514
    %584 = vmatpush1.msra.mxu0 %v513
    %585 = vmatprep.subr.mxu0 %v512
    %586 = vmatpush1.msra.mxu0 %v511
    %587 = vmatprep.subr.mxu0 %v510
    %588 = vmatpush1.msra.mxu0 %v509
    %589 = vmatprep.subr.mxu0 %v508
    %590 = vmatpush1.msra.mxu0 %v507
    %591 = vmatprep.subr.mxu0 %v506
    %592 = vmatpush1.msra.mxu0 %v505
    %593 = vmatprep.subr.mxu0 %v504
    %594 = vmatpush1.msra.mxu0 %v503
    %595 = vmatprep.subr.mxu0 %v502
    %596 = vmatpush1.msra.mxu0 %v501
    %597 = vmatprep.subr.mxu0 %v500
    %598 = vmatpush1.msra.mxu0 %v499
    %599 = vmatprep.subr.mxu0 %v498
    %600 = vmatpush1.msra.mxu0 %v497
    %601 = vmatprep.subr.mxu0 %v496
    %602 = vmatpush1.msra.mxu0 %v495
    %603 = vmatprep.subr.mxu0 %v558
    %604 = vmatpush2.msra.mxu0 %v557
    %605 = vmatprep.subr.mxu0 %v556
    %606 = vmatpush2.msra.mxu0 %v555
    %607 = vmatprep.subr.mxu0 %v554
    %608 = vmatpush2.msra.mxu0 %v553
    %609 = vmatprep.subr.mxu0 %v552
    %610 = vmatpush2.msra.mxu0 %v551
    %611 = vmatprep.subr.mxu0 %v550
    %612 = vmatpush2.msra.mxu0 %v549
    %613 = vmatprep.subr.mxu0 %v548
    %614 = vmatpush2.msra.mxu0 %v547
    %615 = vmatprep.subr.mxu0 %v546
    %616 = vmatpush2.msra.mxu0 %v545
    %617 = vmatprep.subr.mxu0 %v544
    %618 = vmatpush2.msra.mxu0 %v543
    %619 = vmatprep.subr.mxu0 %v542
    %620 = vmatpush2.msra.mxu0 %v541
    %621 = vmatprep.subr.mxu0 %v540
    %622 = vmatpush2.msra.mxu0 %v539
    %623 = vmatprep.subr.mxu0 %v538
    %624 = vmatpush2.msra.mxu0 %v537
    %625 = vmatprep.subr.mxu0 %v536
    %626 = vmatpush2.msra.mxu0 %v535
    %627 = vmatprep.subr.mxu0 %v534
    %628 = vmatpush2.msra.mxu0 %v533
    %629 = vmatprep.subr.mxu0 %v532
    %630 = vmatpush2.msra.mxu0 %v531
    %631 = vmatprep.subr.mxu0 %v530
    %632 = vmatpush2.msra.mxu0 %v529
    %633 = vmatprep.subr.mxu0 %v528
    %634 = vmatpush2.msra.mxu0 %v527
    %635 = vmatprep.mubr.f32.mxu0 %v492
    %636 = vmatmul.mubr.f32.gmra.mxu0 %v491
    %v637 = vpop.f32.mrf.mxu0
    %v638 = vadd.f32 %v564, %v637
    %v639 = vpop.f32.mrf.mxu0
    %v640 = vadd.f32 %v568, %v639
    %641 = vmatprep.mubr.f32.mxu0 %v494
    %642 = vmatmul.mubr.f32.gmra.mxu0 %v493
    %v643 = vpop.f32.mrf.mxu0
    %v644 = vadd.f32 %v564, %v643
    %v645 = vpop.f32.mrf.mxu0
    %v646 = vadd.f32 %v568, %v645
    %647 = vdwg.mxu0
    %v648 = vand.u32 2147483647, %v292
    %vm649 = vcmp.le.f32.partialorder %v648, 0.7853982
    %vm650 = vcmp.lt.s32.totalorder %v292, 0
    %v651 = vand.u32 %v292, 2139095040
    %v652 = vshrl.u32 %v651, 23
    %v653 = vsub.s32 %v652, 127
    %v654 = vand.u32 2147483647, %v292
    %v655 = vand.u32 %v654, 8388607
    %v656 = vor.u32 %v655, 8388608
    %v657 = vsub.s32 0, %v656
    %v658 = vadd.s32 %v653, 1
    %vm659 = vcmp.gt.s32.totalorder %v658, 0
    %v660 = vsel %vm659, %v658, 0
    %v661 = vshrl.u32 %v660, 5
    %v662 = vand.u32 %v660, 31
    %v663 = vsub.s32 32, %v662
    %v664 = vshrl.u32 683565275, %v663
    %v665 = vshll.u32 683565275, %v662
    %v666 = vshrl.u32 2475754826, %v663
    %v667 = vor.u32 %v665, %v666
    %v668 = vshll.u32 2475754826, %v662
    %v669 = vshrl.u32 2131351028, %v663
    %v670 = vor.u32 %v668, %v669
    %v671 = vshll.u32 2131351028, %v662
    %v672 = vshrl.u32 2102212464, %v663
    %v673 = vor.u32 %v671, %v672
    %v674 = vshll.u32 2102212464, %v662
    %v675 = vshrl.u32 920167782, %v663
    %v676 = vor.u32 %v674, %v675
    %v677 = vshll.u32 920167782, %v662
    %v678 = vshrl.u32 1326507024, %v663
    %v679 = vor.u32 %v677, %v678
    %vm680 = vcmp.lt.s32.totalorder %v661, 1
    %vm681 = vcmp.lt.s32.totalorder %v661, 2
    %vm682 = vcmp.lt.s32.totalorder %v661, 3
    %vm683 = vcmp.lt.s32.totalorder %v661, 4
    %v684 = vsel %vm680, %v664, %v667
    %v685 = vsel %vm683, %v673, 2102212464
    %v686 = vsel %vm682, %v670, %v685
    %v687 = vsel %vm681, %v684, %v686
    %v688 = vsel %vm680, %v667, %v670
    %v689 = vsel %vm683, %v676, 920167782
    %v690 = vsel %vm682, %v673, %v689
    %v691 = vsel %vm681, %v688, %v690
    %v692 = vsel %vm680, %v670, %v673
    %v693 = vsel %vm683, %v679, 1326507024
    %v694 = vsel %vm682, %v676, %v693
    %v695 = vsel %vm681, %v692, %v694
    %v696 = vshll.u32 %v656, 8
    %v697 = vmul.u32.u64.compose %v696, %v695
    %v698 = vextract.low.u32 %v697
    %v699 = vextract.high.u32 %v697
    %v700 = vmul.u32.u64.compose %v696, %v691
    %v701 = vextract.low.u32 %v700
    %v702 = vextract.high.u32 %v700
    %v703 = vmul.u32 %v696, %v687
    %v704 = vadd.s32 %v699, %v701
    %vm705 = vc.u32 %v699, %v701
    %v706 = vadd.s32 %v702, 1
    %v707 = vsel %vm705, %v706, %v702
    %v708 = vadd.s32 %v703, %v707
    %v709 = vadd.s32 %v708, 536870912
    %v710 = vshrl.u32 %v709, 30
    %v711 = vshll.u32 %v710, 30
    %v712 = vsub.s32 %v708, %v711
    %vm713 = vcmp.lt.s32.totalorder %v712, 0
    %v714 = vsub.s32 0, %v712
    %v715 = vsel %vm713, %v714, %v712
    %v716 = vclz %v715
    %v717 = vsub.s32 %v716, 2
    %vm718 = vcmp.gt.s32.totalorder 0, %v717
    %v719 = vsel %vm718, 0, %v717
    %v720 = vsub.s32 32, %v719
    %v721 = vshll.u32 %v712, %v719
    %v722 = vshrl.u32 %v704, %v720
    %v723 = vor.u32 %v721, %v722
    %v724 = vsub.s32 4294967266, %v719
    %v725 = vadd.s32 %v724, 127
    %v726 = vshll.u32 %v725, 23
    %v727 = vor.u32 4788187, %v726
    %v728 = vand.u32 2147483647, %v727
    %v730 = vcvt.s32.f32 %v723
    %v731 = vmul.f32 %v730, %v728
    %v732 = vxor.u32 %v731, 2147483648
    %v733 = vsel %vm650, %v732, %v731
    %v734 = vsub.s32 4, %v710
    %v735 = vsel %vm650, %v734, %v710
    %v736 = vsel %vm649, %v292, %v733
    %v737 = vsel %vm649, 0, %v735
    %v738 = vcosq.f32.pop %v736
    %v739 = vsinq.f32.pop %v736
    %vm740 = vweird.f32 %v292
    %v741 = vand.u32 %v737, 3
    %vm742 = vcmp.lt.s32.totalorder %v741, 2
    %vm743 = vcmp.eq.s32.totalorder %v741, 0
    %v744 = vxor.u32 %v739, 2147483648
    %v745 = vsel %vm743, %v738, %v744
    %vm746 = vcmp.eq.s32.totalorder %v741, 2
    %v747 = vxor.u32 %v738, 2147483648
    %v748 = vsel %vm746, %v747, %v739
    %v749 = vsel %vm742, %v745, %v748
    %v750 = vsel %vm740, nan, %v749
    %v751 = vand.u32 2147483647, %v294
    %vm752 = vcmp.le.f32.partialorder %v751, 0.7853982
    %vm753 = vcmp.lt.s32.totalorder %v294, 0
    %v754 = vand.u32 %v294, 2139095040
    %v755 = vshrl.u32 %v754, 23
    %v756 = vsub.s32 %v755, 127
    %v757 = vand.u32 2147483647, %v294
    %v758 = vand.u32 %v757, 8388607
    %v759 = vor.u32 %v758, 8388608
    %v760 = vsub.s32 0, %v759
    %v761 = vadd.s32 %v756, 1
    %vm762 = vcmp.gt.s32.totalorder %v761, 0
    %v763 = vsel %vm762, %v761, 0
    %v764 = vshrl.u32 %v763, 5
    %v765 = vand.u32 %v763, 31
    %v766 = vsub.s32 32, %v765
    %v767 = vshrl.u32 683565275, %v766
    %v768 = vshll.u32 683565275, %v765
    %v769 = vshrl.u32 2475754826, %v766
    %v770 = vor.u32 %v768, %v769
    %v771 = vshll.u32 2475754826, %v765
    %v772 = vshrl.u32 2131351028, %v766
    %v773 = vor.u32 %v771, %v772
    %v774 = vshll.u32 2131351028, %v765
    %v775 = vshrl.u32 2102212464, %v766
    %v776 = vor.u32 %v774, %v775
    %v777 = vshll.u32 2102212464, %v765
    %v778 = vshrl.u32 920167782, %v766
    %v779 = vor.u32 %v777, %v778
    %v780 = vshll.u32 920167782, %v765
    %v781 = vshrl.u32 1326507024, %v766
    %v782 = vor.u32 %v780, %v781
    %vm783 = vcmp.lt.s32.totalorder %v764, 1
    %vm784 = vcmp.lt.s32.totalorder %v764, 2
    %vm785 = vcmp.lt.s32.totalorder %v764, 3
    %vm786 = vcmp.lt.s32.totalorder %v764, 4
    %v787 = vsel %vm783, %v767, %v770
    %v788 = vsel %vm786, %v776, 2102212464
    %v789 = vsel %vm785, %v773, %v788
    %v790 = vsel %vm784, %v787, %v789
    %v791 = vsel %vm783, %v770, %v773
    %v792 = vsel %vm786, %v779, 920167782
    %v793 = vsel %vm785, %v776, %v792
    %v794 = vsel %vm784, %v791, %v793
    %v795 = vsel %vm783, %v773, %v776
    %v796 = vsel %vm786, %v782, 1326507024
    %v797 = vsel %vm785, %v779, %v796
    %v798 = vsel %vm784, %v795, %v797
    %v799 = vshll.u32 %v759, 8
    %v800 = vmul.u32.u64.compose %v799, %v798
    %v801 = vextract.low.u32 %v800
    %v802 = vextract.high.u32 %v800
    %v803 = vmul.u32.u64.compose %v799, %v794
    %v804 = vextract.low.u32 %v803
    %v805 = vextract.high.u32 %v803
    %v806 = vmul.u32 %v799, %v790
    %v807 = vadd.s32 %v802, %v804
    %vm808 = vc.u32 %v802, %v804
    %v809 = vadd.s32 %v805, 1
    %v810 = vsel %vm808, %v809, %v805
    %v811 = vadd.s32 %v806, %v810
    %v812 = vadd.s32 %v811, 536870912
    %v813 = vshrl.u32 %v812, 30
    %v814 = vshll.u32 %v813, 30
    %v815 = vsub.s32 %v811, %v814
    %vm816 = vcmp.lt.s32.totalorder %v815, 0
    %v817 = vsub.s32 0, %v815
    %v818 = vsel %vm816, %v817, %v815
    %v819 = vclz %v818
    %v820 = vsub.s32 %v819, 2
    %vm821 = vcmp.gt.s32.totalorder 0, %v820
    %v822 = vsel %vm821, 0, %v820
    %v823 = vsub.s32 32, %v822
    %v824 = vshll.u32 %v815, %v822
    %v825 = vshrl.u32 %v807, %v823
    %v826 = vor.u32 %v824, %v825
    %v827 = vsub.s32 4294967266, %v822
    %v828 = vadd.s32 %v827, 127
    %v829 = vshll.u32 %v828, 23
    %v830 = vor.u32 4788187, %v829
    %v831 = vand.u32 2147483647, %v830
    %v833 = vcvt.s32.f32 %v826
    %v834 = vmul.f32 %v833, %v831
    %v835 = vxor.u32 %v834, 2147483648
    %v836 = vsel %vm753, %v835, %v834
    %v837 = vsub.s32 4, %v813
    %v838 = vsel %vm753, %v837, %v813
    %v839 = vsel %vm752, %v294, %v836
    %v840 = vsel %vm752, 0, %v838
    %v841 = vcosq.f32.pop %v839
    %v842 = vsinq.f32.pop %v839
    %vm843 = vweird.f32 %v294
    %v844 = vand.u32 %v840, 3
    %vm845 = vcmp.lt.s32.totalorder %v844, 2
    %vm846 = vcmp.eq.s32.totalorder %v844, 0
    %v847 = vxor.u32 %v842, 2147483648
    %v848 = vsel %vm846, %v841, %v847
    %vm849 = vcmp.eq.s32.totalorder %v844, 2
    %v850 = vxor.u32 %v841, 2147483648
    %v851 = vsel %vm849, %v850, %v842
    %v852 = vsel %vm845, %v848, %v851
    %v853 = vsel %vm843, nan, %v852
    %v854 = vand.u32 2147483647, %v298
    %vm855 = vcmp.le.f32.partialorder %v854, 0.7853982
    %vm856 = vcmp.lt.s32.totalorder %v298, 0
    %v857 = vand.u32 %v298, 2139095040
    %v858 = vshrl.u32 %v857, 23
    %v859 = vsub.s32 %v858, 127
    %v860 = vand.u32 2147483647, %v298
    %v861 = vand.u32 %v860, 8388607
    %v862 = vor.u32 %v861, 8388608
    %v863 = vsub.s32 0, %v862
    %v864 = vadd.s32 %v859, 1
    %vm865 = vcmp.gt.s32.totalorder %v864, 0
    %v866 = vsel %vm865, %v864, 0
    %v867 = vshrl.u32 %v866, 5
    %v868 = vand.u32 %v866, 31
    %v869 = vsub.s32 32, %v868
    %v870 = vshrl.u32 683565275, %v869
    %v871 = vshll.u32 683565275, %v868
    %v872 = vshrl.u32 2475754826, %v869
    %v873 = vor.u32 %v871, %v872
    %v874 = vshll.u32 2475754826, %v868
    %v875 = vshrl.u32 2131351028, %v869
    %v876 = vor.u32 %v874, %v875
    %v877 = vshll.u32 2131351028, %v868
    %v878 = vshrl.u32 2102212464, %v869
    %v879 = vor.u32 %v877, %v878
    %v880 = vshll.u32 2102212464, %v868
    %v881 = vshrl.u32 920167782, %v869
    %v882 = vor.u32 %v880, %v881
    %v883 = vshll.u32 920167782, %v868
    %v884 = vshrl.u32 1326507024, %v869
    %v885 = vor.u32 %v883, %v884
    %vm886 = vcmp.lt.s32.totalorder %v867, 1
    %vm887 = vcmp.lt.s32.totalorder %v867, 2
    %vm888 = vcmp.lt.s32.totalorder %v867, 3
    %vm889 = vcmp.lt.s32.totalorder %v867, 4
    %v890 = vsel %vm886, %v870, %v873
    %v891 = vsel %vm889, %v879, 2102212464
    %v892 = vsel %vm888, %v876, %v891
    %v893 = vsel %vm887, %v890, %v892
    %v894 = vsel %vm886, %v873, %v876
    %v895 = vsel %vm889, %v882, 920167782
    %v896 = vsel %vm888, %v879, %v895
    %v897 = vsel %vm887, %v894, %v896
    %v898 = vsel %vm886, %v876, %v879
    %v899 = vsel %vm889, %v885, 1326507024
    %v900 = vsel %vm888, %v882, %v899
    %v901 = vsel %vm887, %v898, %v900
    %v902 = vshll.u32 %v862, 8
    %v903 = vmul.u32.u64.compose %v902, %v901
    %v904 = vextract.low.u32 %v903
    %v905 = vextract.high.u32 %v903
    %v906 = vmul.u32.u64.compose %v902, %v897
    %v907 = vextract.low.u32 %v906
    %v908 = vextract.high.u32 %v906
    %v909 = vmul.u32 %v902, %v893
    %v910 = vadd.s32 %v905, %v907
    %vm911 = vc.u32 %v905, %v907
    %v912 = vadd.s32 %v908, 1
    %v913 = vsel %vm911, %v912, %v908
    %v914 = vadd.s32 %v909, %v913
    %v915 = vadd.s32 %v914, 536870912
    %v916 = vshrl.u32 %v915, 30
    %v917 = vshll.u32 %v916, 30
    %v918 = vsub.s32 %v914, %v917
    %vm919 = vcmp.lt.s32.totalorder %v918, 0
    %v920 = vsub.s32 0, %v918
    %v921 = vsel %vm919, %v920, %v918
    %v922 = vclz %v921
    %v923 = vsub.s32 %v922, 2
    %vm924 = vcmp.gt.s32.totalorder 0, %v923
    %v925 = vsel %vm924, 0, %v923
    %v926 = vsub.s32 32, %v925
    %v927 = vshll.u32 %v918, %v925
    %v928 = vshrl.u32 %v910, %v926
    %v929 = vor.u32 %v927, %v928
    %v930 = vsub.s32 4294967266, %v925
    %v931 = vadd.s32 %v930, 127
    %v932 = vshll.u32 %v931, 23
    %v933 = vor.u32 4788187, %v932
    %v934 = vand.u32 2147483647, %v933
    %v936 = vcvt.s32.f32 %v929
    %v937 = vmul.f32 %v936, %v934
    %v938 = vxor.u32 %v937, 2147483648
    %v939 = vsel %vm856, %v938, %v937
    %v940 = vsub.s32 4, %v916
    %v941 = vsel %vm856, %v940, %v916
    %v942 = vsel %vm855, %v298, %v939
    %v943 = vsel %vm855, 0, %v941
    %v944 = vcosq.f32.pop %v942
    %v945 = vsinq.f32.pop %v942
    %vm946 = vweird.f32 %v298
    %v947 = vand.u32 %v943, 3
    %vm948 = vcmp.lt.s32.totalorder %v947, 2
    %vm949 = vcmp.eq.s32.totalorder %v947, 0
    %v950 = vxor.u32 %v945, 2147483648
    %v951 = vsel %vm949, %v944, %v950
    %vm952 = vcmp.eq.s32.totalorder %v947, 2
    %v953 = vxor.u32 %v944, 2147483648
    %v954 = vsel %vm952, %v953, %v945
    %v955 = vsel %vm948, %v951, %v954
    %v956 = vsel %vm946, nan, %v955
    %v957 = vand.u32 2147483647, %v300
    %vm958 = vcmp.le.f32.partialorder %v957, 0.7853982
    %vm959 = vcmp.lt.s32.totalorder %v300, 0
    %v960 = vand.u32 %v300, 2139095040
    %v961 = vshrl.u32 %v960, 23
    %v962 = vsub.s32 %v961, 127
    %v963 = vand.u32 2147483647, %v300
    %v964 = vand.u32 %v963, 8388607
    %v965 = vor.u32 %v964, 8388608
    %v966 = vsub.s32 0, %v965
    %v967 = vadd.s32 %v962, 1
    %vm968 = vcmp.gt.s32.totalorder %v967, 0
    %v969 = vsel %vm968, %v967, 0
    %v970 = vshrl.u32 %v969, 5
    %v971 = vand.u32 %v969, 31
    %v972 = vsub.s32 32, %v971
    %v973 = vshrl.u32 683565275, %v972
    %v974 = vshll.u32 683565275, %v971
    %v975 = vshrl.u32 2475754826, %v972
    %v976 = vor.u32 %v974, %v975
    %v977 = vshll.u32 2475754826, %v971
    %v978 = vshrl.u32 2131351028, %v972
    %v979 = vor.u32 %v977, %v978
    %v980 = vshll.u32 2131351028, %v971
    %v981 = vshrl.u32 2102212464, %v972
    %v982 = vor.u32 %v980, %v981
    %v983 = vshll.u32 2102212464, %v971
    %v984 = vshrl.u32 920167782, %v972
    %v985 = vor.u32 %v983, %v984
    %v986 = vshll.u32 920167782, %v971
    %v987 = vshrl.u32 1326507024, %v972
    %v988 = vor.u32 %v986, %v987
    %vm989 = vcmp.lt.s32.totalorder %v970, 1
    %vm990 = vcmp.lt.s32.totalorder %v970, 2
    %vm991 = vcmp.lt.s32.totalorder %v970, 3
    %vm992 = vcmp.lt.s32.totalorder %v970, 4
    %v993 = vsel %vm989, %v973, %v976
    %v994 = vsel %vm992, %v982, 2102212464
    %v995 = vsel %vm991, %v979, %v994
    %v996 = vsel %vm990, %v993, %v995
    %v997 = vsel %vm989, %v976, %v979
    %v998 = vsel %vm992, %v985, 920167782
    %v999 = vsel %vm991, %v982, %v998
    %v1000 = vsel %vm990, %v997, %v999
    %v1001 = vsel %vm989, %v979, %v982
    %v1002 = vsel %vm992, %v988, 1326507024
    %v1003 = vsel %vm991, %v985, %v1002
    %v1004 = vsel %vm990, %v1001, %v1003
    %v1005 = vshll.u32 %v965, 8
    %v1006 = vmul.u32.u64.compose %v1005, %v1004
    %v1007 = vextract.low.u32 %v1006
    %v1008 = vextract.high.u32 %v1006
    %v1009 = vmul.u32.u64.compose %v1005, %v1000
    %v1010 = vextract.low.u32 %v1009
    %v1011 = vextract.high.u32 %v1009
    %v1012 = vmul.u32 %v1005, %v996
    %v1013 = vadd.s32 %v1008, %v1010
    %vm1014 = vc.u32 %v1008, %v1010
    %v1015 = vadd.s32 %v1011, 1
    %v1016 = vsel %vm1014, %v1015, %v1011
    %v1017 = vadd.s32 %v1012, %v1016
    %v1018 = vadd.s32 %v1017, 536870912
    %v1019 = vshrl.u32 %v1018, 30
    %v1020 = vshll.u32 %v1019, 30
    %v1021 = vsub.s32 %v1017, %v1020
    %vm1022 = vcmp.lt.s32.totalorder %v1021, 0
    %v1023 = vsub.s32 0, %v1021
    %v1024 = vsel %vm1022, %v1023, %v1021
    %v1025 = vclz %v1024
    %v1026 = vsub.s32 %v1025, 2
    %vm1027 = vcmp.gt.s32.totalorder 0, %v1026
    %v1028 = vsel %vm1027, 0, %v1026
    %v1029 = vsub.s32 32, %v1028
    %v1030 = vshll.u32 %v1021, %v1028
    %v1031 = vshrl.u32 %v1013, %v1029
    %v1032 = vor.u32 %v1030, %v1031
    %v1033 = vsub.s32 4294967266, %v1028
    %v1034 = vadd.s32 %v1033, 127
    %v1035 = vshll.u32 %v1034, 23
    %v1036 = vor.u32 4788187, %v1035
    %v1037 = vand.u32 2147483647, %v1036
    %v1039 = vcvt.s32.f32 %v1032
    %v1040 = vmul.f32 %v1039, %v1037
    %v1041 = vxor.u32 %v1040, 2147483648
    %v1042 = vsel %vm959, %v1041, %v1040
    %v1043 = vsub.s32 4, %v1019
    %v1044 = vsel %vm959, %v1043, %v1019
    %v1045 = vsel %vm958, %v300, %v1042
    %v1046 = vsel %vm958, 0, %v1044
    %v1047 = vcosq.f32.pop %v1045
    %v1048 = vsinq.f32.pop %v1045
    %vm1049 = vweird.f32 %v300
    %v1050 = vand.u32 %v1046, 3
    %vm1051 = vcmp.lt.s32.totalorder %v1050, 2
    %vm1052 = vcmp.eq.s32.totalorder %v1050, 0
    %v1053 = vxor.u32 %v1048, 2147483648
    %v1054 = vsel %vm1052, %v1047, %v1053
    %vm1055 = vcmp.eq.s32.totalorder %v1050, 2
    %v1056 = vxor.u32 %v1047, 2147483648
    %v1057 = vsel %vm1055, %v1056, %v1048
    %v1058 = vsel %vm1051, %v1054, %v1057
    %v1059 = vsel %vm1049, nan, %v1058
    %v1060 = vadd.f32 %v638, %v750
    %v1061 = vadd.f32 %v640, %v853
    %v1062 = vadd.f32 %v644, %v956
    %v1063 = vadd.f32 %v646, %v1059
    %v1064 = vpack.c.bf16 %v1062, %v1060
    %v1065 = vpack.c.bf16 %v1063, %v1061
    %v1068 = vunpack.c.l.b16 %v1064
    %v1069 = vunpack.c.l.b16 %v1065
    %v1070 = vunpack.c.h.b16 %v1064
    %v1071 = vunpack.c.h.b16 %v1065
    %v1072 = vpack.c.b16 %v1069, %v1068
    %v1073 = vpack.c.b16 %v1071, %v1070
    %1076 = vst [vmem:[#allocation11] sm:$0xff] %v1072
    %1077 = vst [vmem:[#allocation11 + $0x8] sm:$0xff] %v1073
    // Predicated region
    $region50: #{tpu_custom_call.1} parent=1 // pred_check
      _
    $region51: #{tpu_custom_call.1} parent=1 // pred_check_branch
      %1079 = sbr.rel (0) target = $region53
    $region52: #{tpu_custom_call.1} parent=1 // pred_region
      %s1081 = ssub.s32 256, 256
      %1082 = vsyncadd [#allocation4], %s1081
      %s1083 = sshll.u32 [#allocation11], 4
      %s1084 = int_to_ptr.vmem [resolvable:$true] %s1083
      %1089 = dma.vmem_to_hbm [thread:$0]  %s1084, 256, %s7, [#allocation4], 128, 128, 8
    $region53: #{tpu_custom_call.1} parent=1 // pred_fallthru
      _
    // Predicated region
    $region54: #{tpu_custom_call.1} parent=1 // pred_check
      _
    $region55: #{tpu_custom_call.1} parent=1 // pred_check_branch
      %1091 = sbr.rel (0) target = $region57
    $region56: #{tpu_custom_call.1} parent=1 // pred_region
      %1092 = dma.done [#allocation4], 256
    $region57: #{tpu_custom_call.1} parent=1 // pred_fallthru
      _
    %1093 = vsyncpa [#allocation3], 1
    %1094 = vsyncpa [#allocation6], 1
    %1095 = vsyncpa [#allocation9], 1
    %1096 = vsyncpa [#allocation4], 1

</llo_original>
